<compile_context>
chip_gen: v5e
topology: v5e:2x2
jax: 0.10.0
libtpu: 0.0.40
codegen_flags: <defaults>
</compile_context>

<pallas_src>
import jax
import jax.numpy as jnp
from jax import lax
from jax.experimental import pallas as pl
from jax.experimental.pallas import tpu as pltpu


def _output_layer_kernel(x_ref, w_ref, mask_ref, logits_ref, logprobs_ref):
    # x_ref:    (TM, D)   hidden states for this row tile
    # w_ref:    (V,  D)   tied embedding weight
    # mask_ref: (1,  V)   support mask (already log-transformed / zeros)
    x = x_ref[...]
    w = w_ref[...]

    # logits = x @ W^T on the MXU, f32 accumulate.
    logits = lax.dot_general(
        x, w,
        (((1,), (1,)), ((), ())),
        preferred_element_type=jnp.float32,
        precision=lax.Precision.HIGHEST,
    )
    logits = logits + mask_ref[...]          # (1, V) broadcast over rows
    logits_ref[...] = logits.astype(logits_ref.dtype)

    # Numerically stable log_softmax along the vocab (last, lane) axis.
    m = jnp.max(logits, axis=-1, keepdims=True)
    shifted = logits - m
    lse = jnp.log(jnp.sum(jnp.exp(shifted), axis=-1, keepdims=True))
    logprobs_ref[...] = (shifted - lse).astype(logprobs_ref.dtype)


def output_layer(seq_hidden, emb_weight, support_mask=None, *, row_tile=None):
    """Pallas equivalent of OutputLayer.forward.

    seq_hidden:   (batch, seq_len, d_model) — output of the transformer trunk.
    emb_weight:   (vocab_size, d_model)     — tied embedding matrix
                                              (embedding(seq, reverse=True) == seq @ W^T).
    support_mask: (vocab_size,) or None     — raw mask; log() is applied here,
                                              matching the module __init__.
    Returns (logits_masked, log_probs), each (batch, seq_len, vocab_size) f32.
    """
    B, S, D = seq_hidden.shape
    V, D2 = emb_weight.shape
    assert D == D2, (D, D2)

    if support_mask is None:
        mask_row = jnp.zeros((1, V), jnp.float32)
    else:
        mask_row = jnp.log(support_mask.astype(jnp.float32)).reshape(1, V)

    x2d = seq_hidden.reshape(B * S, D).astype(jnp.float32)
    M = B * S

    # Row tile: multiple of 8 (sublane granularity); cap so the two (TM, V) f32
    # output buffers (double-buffered) plus the (V, D) weight stay well inside
    # scoped VMEM even on v7x (32 MiB scoped budget).
    if row_tile is None:
        row_tile = min(128, max(8, (M // 8) * 8 or 8))
    Mp = pl.cdiv(M, row_tile) * row_tile
    if Mp != M:
        x2d = jnp.pad(x2d, ((0, Mp - M), (0, 0)))

    grid = (Mp // row_tile,)

    # TODO(synk): for very large vocab sizes the (V, D) weight / (TM, V) output
    # blocks should also be tiled over V with an online (two-pass) logsumexp.
    logits2d, logprobs2d = pl.pallas_call(
        _output_layer_kernel,
        out_shape=(
            jax.ShapeDtypeStruct((Mp, V), jnp.float32),
            jax.ShapeDtypeStruct((Mp, V), jnp.float32),
        ),
        grid_spec=pltpu.PrefetchScalarGridSpec(
            num_scalar_prefetch=0,
            grid=grid,
            in_specs=[
                pl.BlockSpec((row_tile, D), lambda i: (i, 0)),  # hidden rows
                pl.BlockSpec((V, D), lambda i: (0, 0)),          # tied embedding
                pl.BlockSpec((1, V), lambda i: (0, 0)),          # support mask row
            ],
            out_specs=[
                pl.BlockSpec((row_tile, V), lambda i: (i, 0)),   # logits_masked
                pl.BlockSpec((row_tile, V), lambda i: (i, 0)),   # log_probs
            ],
        ),
        compiler_params=pltpu.CompilerParams(
            dimension_semantics=("parallel",),
        ),
    )(x2d, emb_weight.astype(jnp.float32), mask_row)

    logits = logits2d[:M].reshape(B, S, V)
    logprobs = logprobs2d[:M].reshape(B, S, V)
    return logits, logprobs


def _reference(seq_hidden, emb_weight, support_mask):
    logits = jnp.einsum(
        "bsd,vd->bsv",
        seq_hidden.astype(jnp.float32),
        emb_weight.astype(jnp.float32),
        precision=lax.Precision.HIGHEST,
    )
    if support_mask is None:
        mask = jnp.zeros((emb_weight.shape[0],), jnp.float32)
    else:
        mask = jnp.log(support_mask.astype(jnp.float32))
    logits_masked = logits + mask
    probs = jax.nn.log_softmax(logits_masked, axis=-1)
    return logits_masked, probs


if __name__ == "__main__":
    key = jax.random.PRNGKey(0)
    k_x, k_w, k_m = jax.random.split(key, 3)

    batch, seq_len, d_model, vocab = 2, 8, 32, 128

    x = jax.random.normal(k_x, (batch, seq_len, d_model), dtype=jnp.float32)
    w_emb = jax.random.normal(k_w, (vocab, d_model), dtype=jnp.float32) * 0.1
    # strictly-positive support mask (module takes log of it in __init__)
    support_mask = jax.random.uniform(k_m, (vocab,), minval=0.5, maxval=1.5)

    logits, logprobs = output_layer(x, w_emb, support_mask)
    logits = jax.block_until_ready(logits)
    logprobs = jax.block_until_ready(logprobs)

    ref_logits, ref_logprobs = _reference(x, w_emb, support_mask)

    assert logits.shape == (batch, seq_len, vocab), logits.shape
    assert logprobs.shape == (batch, seq_len, vocab), logprobs.shape
    assert jnp.allclose(logits, ref_logits, atol=1e-4, rtol=1e-4), \
        float(jnp.abs(logits - ref_logits).max())
    assert jnp.allclose(logprobs, ref_logprobs, atol=1e-4, rtol=1e-4), \
        float(jnp.abs(logprobs - ref_logprobs).max())
    # log-probs must normalize
    assert jnp.allclose(jnp.sum(jnp.exp(logprobs), axis=-1), 1.0, atol=1e-4)

    # Also exercise the support_mask=None path (mask buffer = zeros).
    logits0, logprobs0 = output_layer(x, w_emb, None)
    ref_logits0, ref_logprobs0 = _reference(x, w_emb, None)
    assert jnp.allclose(logits0, ref_logits0, atol=1e-4, rtol=1e-4)
    assert jnp.allclose(logprobs0, ref_logprobs0, atol=1e-4, rtol=1e-4)

    print("KERNEL_OK")
</pallas_src>

<mosaic_0001>
module attributes {stable_mosaic.version = 11 : i64} {
  func.func @_output_layer_kernel(%arg0: i32, %arg1: memref<16x32xf32, #tpu.memory_space<vmem>>, %arg2: memref<128x32xf32, #tpu.memory_space<vmem>>, %arg3: memref<1x128xf32, #tpu.memory_space<vmem>>, %arg4: memref<16x128xf32, #tpu.memory_space<vmem>>, %arg5: memref<16x128xf32, #tpu.memory_space<vmem>>) attributes {dimension_semantics = [#tpu.dimension_semantics<parallel>], iteration_bounds = array<i64: 1>, scalar_prefetch = 0 : i64, scratch_operands = 0 : i64, tpu.core_type = #tpu.core_type<tc>, window_params = [{transform_indices = @transform_0, window_bounds = array<i64: 16, 32>}, {pipeline_mode = #tpu.pipeline_mode<synchronous>, transform_indices = @transform_1, window_bounds = array<i64: 128, 32>}, {pipeline_mode = #tpu.pipeline_mode<synchronous>, transform_indices = @transform_2, window_bounds = array<i64: 1, 128>}, {transform_indices = @transform_3, window_bounds = array<i64: 16, 128>}, {transform_indices = @transform_4, window_bounds = array<i64: 16, 128>}]} {
    %c0 = arith.constant 0 : index
    %c0_0 = arith.constant 0 : index
    %0 = vector.load %arg1[%c0, %c0_0] : memref<16x32xf32, #tpu.memory_space<vmem>>, vector<16x32xf32>
    %c0_1 = arith.constant 0 : index
    %c0_2 = arith.constant 0 : index
    %1 = vector.load %arg2[%c0_1, %c0_2] : memref<128x32xf32, #tpu.memory_space<vmem>>, vector<128x32xf32>
    %cst = arith.constant dense<0.000000e+00> : vector<16x128xf32>
    %2 = tpu.matmul %0, %1, %cst {dimension_numbers = #tpu.dot_dimension_numbers<[1], [1], [0], [0], [0, 0, 1, 0], [], []>, precision = #tpu.contract_precision<fp32>} : vector<16x32xf32>, vector<128x32xf32>, vector<16x128xf32> -> vector<16x128xf32>
    %c0_3 = arith.constant 0 : index
    %c0_4 = arith.constant 0 : index
    %3 = vector.load %arg3[%c0_3, %c0_4] : memref<1x128xf32, #tpu.memory_space<vmem>>, vector<1x128xf32>
    %4 = vector.broadcast %3 : vector<1x128xf32> to vector<16x128xf32>
    %5 = arith.addf %2, %4 : vector<16x128xf32>
    %c0_5 = arith.constant 0 : index
    %c0_6 = arith.constant 0 : index
    %6 = vector.load %arg4[%c0_5, %c0_6] : memref<16x128xf32, #tpu.memory_space<vmem>>, vector<16x128xf32>
    tpu.vector_store %arg4[%c0_5, %c0_6], %5 {strides = array<i32>} : memref<16x128xf32, #tpu.memory_space<vmem>>, vector<16x128xf32>,
    %cst_7 = arith.constant dense<0xFF800000> : vector<16xf32>
    %7 = vector.multi_reduction <maximumf>, %5, %cst_7 [1] : vector<16x128xf32> to vector<16xf32>
    %8 = vector.shape_cast %7 : vector<16xf32> to vector<16x1xf32>
    %9 = vector.broadcast %8 : vector<16x1xf32> to vector<16x128xf32>
    %10 = arith.subf %5, %9 : vector<16x128xf32>
    %11 = math.exp %10 : vector<16x128xf32>
    %cst_8 = arith.constant dense<0.000000e+00> : vector<16xf32>
    %12 = vector.multi_reduction <add>, %11, %cst_8 [1] : vector<16x128xf32> to vector<16xf32>
    %13 = vector.shape_cast %12 : vector<16xf32> to vector<16x1xf32>
    %14 = math.log %13 : vector<16x1xf32>
    %15 = vector.broadcast %14 : vector<16x1xf32> to vector<16x128xf32>
    %16 = arith.subf %10, %15 : vector<16x128xf32>
    %c0_9 = arith.constant 0 : index
    %c0_10 = arith.constant 0 : index
    %17 = vector.load %arg5[%c0_9, %c0_10] : memref<16x128xf32, #tpu.memory_space<vmem>>, vector<16x128xf32>
    tpu.vector_store %arg5[%c0_9, %c0_10], %16 {strides = array<i32>} : memref<16x128xf32, #tpu.memory_space<vmem>>, vector<16x128xf32>,
    return
  }
  func.func @transform_0(%arg0: i32) -> (i32, i32) {
    %c0_i32 = arith.constant 0 : i32
    %c0_i32_0 = arith.constant 0 : i32
    return %arg0, %c0_i32 : i32, i32
  }
  func.func @transform_1(%arg0: i32) -> (i32, i32) {
    %c0_i32 = arith.constant 0 : i32
    %c0_i32_0 = arith.constant 0 : i32
    %c0_i32_1 = arith.constant 0 : i32
    return %c0_i32, %c0_i32_0 : i32, i32
  }
  func.func @transform_2(%arg0: i32) -> (i32, i32) {
    %c0_i32 = arith.constant 0 : i32
    %c0_i32_0 = arith.constant 0 : i32
    %c0_i32_1 = arith.constant 0 : i32
    return %c0_i32, %c0_i32_0 : i32, i32
  }
  func.func @transform_3(%arg0: i32) -> (i32, i32) {
    %c0_i32 = arith.constant 0 : i32
    %c0_i32_0 = arith.constant 0 : i32
    return %arg0, %c0_i32 : i32, i32
  }
  func.func @transform_4(%arg0: i32) -> (i32, i32) {
    %c0_i32 = arith.constant 0 : i32
    %c0_i32_0 = arith.constant 0 : i32
    return %arg0, %c0_i32 : i32, i32
  }
}

</mosaic_0001>

<llo_original>
// kernel: tpu_custom_call.1
$region0: #{tpu_custom_call.1}
  #allocation0 [shape = 'u32[]', space=smem, size = 0x4, offset = 0x4, fixed_abs, tag = 'smem constant byte address 0x4 - core index']
  #allocation1 [shape = 'u32[72,128]{1,0:T(1,128)}', space=vmem, size = 0x9000, scoped, tag = 'internal scratch']
  %s0 = inlined_call_operand.vmem [shape: f32[16,32], index: 0, kind: input, shape index: {}]
  %s1 = inlined_call_operand.vmem [shape: f32[128,32], index: 1, kind: input, shape index: {}]
  %s2 = inlined_call_operand.vmem [shape: f32[1,128], index: 2, kind: input, shape index: {}]
  %s3 = inlined_call_operand.hbm [shape: f32[16,128], index: 3, kind: output, shape index: {0}]
  %s4 = inlined_call_operand.hbm [shape: f32[16,128], index: 4, kind: output, shape index: {1}]
  %5 = xla_tuple %s3, %s4
  %s6 = sld [smem:[#allocation0]]
  $region30: #{tpu_custom_call.1} parent=0
    _
  %s8 = ssub.s32 1, %s6
  %s9 = scalar_select 0, %s8, %s6
  $region1: #{tpu_custom_call.1} parent=0
    #allocation2 [shape = 'u8[8192]{0}', space=vmem, size = 0x2000, scoped, tag = 'output window, operand 0, single buffered']
    #allocation3 [shape = 's32[1]{0}', space=sflag, size = 0x4, scoped, tag = 'scoped memory for tpu_custom_call.1']
    #allocation4 [shape = 'u8[8192]{0}', space=vmem, size = 0x2000, scoped, tag = 'output window, operand 1, single buffered']
    #allocation5 [shape = 's32[1]{0}', space=sflag, size = 0x4, scoped, tag = 'scoped memory for tpu_custom_call.1']
    %10 = vsyncpa [#allocation3], 0
    %11 = vsyncpa [#allocation5], 0
    // Predicated region
    $region2: #{tpu_custom_call.1} parent=1 // pred_check
      _
    $region3: #{tpu_custom_call.1} parent=1 // pred_check_branch
      %13 = sbr.rel (0) target = $region5
    $region4: #{tpu_custom_call.1} parent=1 // pred_region
      _
    $region5: #{tpu_custom_call.1} parent=1 // pred_fallthru
      _
    // Predicated region
    $region6: #{tpu_custom_call.1} parent=1 // pred_check
      _
    $region7: #{tpu_custom_call.1} parent=1 // pred_check_branch
      %15 = sbr.rel (0) target = $region9
    $region8: #{tpu_custom_call.1} parent=1 // pred_region
      _
    $region9: #{tpu_custom_call.1} parent=1 // pred_fallthru
      _
    // Predicated region
    $region10: #{tpu_custom_call.1} parent=1 // pred_check
      _
    $region11: #{tpu_custom_call.1} parent=1 // pred_check_branch
      %17 = sbr.rel (0) target = $region13
    $region12: #{tpu_custom_call.1} parent=1 // pred_region
      _
    $region13: #{tpu_custom_call.1} parent=1 // pred_fallthru
      _
    %v18 = vld [vmem:[%s0] sm:$0xff]
    %v19 = vld [vmem:[%s0 + $0x8] sm:$0xff]
    %v20 = vld [vmem:[%s1] sm:$0xff]
    %v21 = vld [vmem:[%s1 + $0x8] sm:$0xff]
    %v22 = vld [vmem:[%s1 + $0x10] sm:$0xff]
    %v23 = vld [vmem:[%s1 + $0x18] sm:$0xff]
    %v24 = vld [vmem:[%s1 + $0x20] sm:$0xff]
    %v25 = vld [vmem:[%s1 + $0x28] sm:$0xff]
    %v26 = vld [vmem:[%s1 + $0x30] sm:$0xff]
    %v27 = vld [vmem:[%s1 + $0x38] sm:$0xff]
    %v28 = vld [vmem:[%s1 + $0x40] sm:$0xff]
    %v29 = vld [vmem:[%s1 + $0x48] sm:$0xff]
    %v30 = vld [vmem:[%s1 + $0x50] sm:$0xff]
    %v31 = vld [vmem:[%s1 + $0x58] sm:$0xff]
    %v32 = vld [vmem:[%s1 + $0x60] sm:$0xff]
    %v33 = vld [vmem:[%s1 + $0x68] sm:$0xff]
    %v34 = vld [vmem:[%s1 + $0x70] sm:$0xff]
    %v35 = vld [vmem:[%s1 + $0x78] sm:$0xff]
    %v36 = vld [vmem:[%s2] sm:$0x1]
    %v38 = vperm.slane %v36, 0
    %vm40 = vcmask 261120
    %v42 = vsel %vm40, %v18, 0
    %v45 = vsel %vm40, %v19, 0
    %v48 = vsel %vm40, %v20, 0
    %v51 = vsel %vm40, %v21, 0
    %v54 = vsel %vm40, %v22, 0
    %v57 = vsel %vm40, %v23, 0
    %v60 = vsel %vm40, %v24, 0
    %v63 = vsel %vm40, %v25, 0
    %v66 = vsel %vm40, %v26, 0
    %v69 = vsel %vm40, %v27, 0
    %v72 = vsel %vm40, %v28, 0
    %v75 = vsel %vm40, %v29, 0
    %v78 = vsel %vm40, %v30, 0
    %v81 = vsel %vm40, %v31, 0
    %v84 = vsel %vm40, %v32, 0
    %v87 = vsel %vm40, %v33, 0
    %v90 = vsel %vm40, %v34, 0
    %v93 = vsel %vm40, %v35, 0
    %v95 = vand.u32 %v93, 4294901760
    %96 = vmatpush.xpose.msra.mxu0 %v95
    %v97 = vand.u32 %v90, 4294901760
    %98 = vmatpush.xpose.msra.mxu0 %v97
    %v99 = vand.u32 %v87, 4294901760
    %100 = vmatpush.xpose.msra.mxu0 %v99
    %v101 = vand.u32 %v84, 4294901760
    %102 = vmatpush.xpose.msra.mxu0 %v101
    %v103 = vand.u32 %v81, 4294901760
    %104 = vmatpush.xpose.msra.mxu0 %v103
    %v105 = vand.u32 %v78, 4294901760
    %106 = vmatpush.xpose.msra.mxu0 %v105
    %v107 = vand.u32 %v75, 4294901760
    %108 = vmatpush.xpose.msra.mxu0 %v107
    %v109 = vand.u32 %v72, 4294901760
    %110 = vmatpush.xpose.msra.mxu0 %v109
    %v111 = vand.u32 %v69, 4294901760
    %112 = vmatpush.xpose.msra.mxu0 %v111
    %v113 = vand.u32 %v66, 4294901760
    %114 = vmatpush.xpose.msra.mxu0 %v113
    %v115 = vand.u32 %v63, 4294901760
    %116 = vmatpush.xpose.msra.mxu0 %v115
    %v117 = vand.u32 %v60, 4294901760
    %118 = vmatpush.xpose.msra.mxu0 %v117
    %v119 = vand.u32 %v57, 4294901760
    %120 = vmatpush.xpose.msra.mxu0 %v119
    %v121 = vand.u32 %v54, 4294901760
    %122 = vmatpush.xpose.msra.mxu0 %v121
    %v123 = vand.u32 %v51, 4294901760
    %124 = vmatpush.xpose.msra.mxu0 %v123
    %v125 = vand.u32 %v48, 4294901760
    %126 = vmatpush.xpose.msra.mxu0 %v125
    %v127 = vand.u32 %v42, 4294901760
    %v128 = vsub.f32 %v42, %v127
    %v129 = vand.u32 %v128, 4294901760
    %v130 = vsub.f32 %v128, %v129
    %v131 = vand.u32 %v130, 4294901760
    %132 = vmatmul.f32.gmra.mxu0 %v131
    %v133 = vpop.f32.mrf.mxu0
    %v134 = vadd.f32 %v38, %v133
    %v135 = vand.u32 %v45, 4294901760
    %v136 = vsub.f32 %v45, %v135
    %v137 = vand.u32 %v136, 4294901760
    %v138 = vsub.f32 %v136, %v137
    %v139 = vand.u32 %v138, 4294901760
    %140 = vmatmul.f32.gmra.mxu0 %v139
    %v141 = vpop.f32.mrf.mxu0
    %v142 = vadd.f32 %v38, %v141
    %143 = vdwg.mxu0
    %v144 = vand.u32 %v93, 4294901760
    %v145 = vsub.f32 %v93, %v144
    %v146 = vand.u32 %v145, 4294901760
    %v147 = vsub.f32 %v145, %v146
    %v148 = vand.u32 %v147, 4294901760
    %149 = vmatpush.xpose.msra.mxu0 %v148
    %v150 = vand.u32 %v90, 4294901760
    %v151 = vsub.f32 %v90, %v150
    %v152 = vand.u32 %v151, 4294901760
    %v153 = vsub.f32 %v151, %v152
    %v154 = vand.u32 %v153, 4294901760
    %155 = vmatpush.xpose.msra.mxu0 %v154
    %v156 = vand.u32 %v87, 4294901760
    %v157 = vsub.f32 %v87, %v156
    %v158 = vand.u32 %v157, 4294901760
    %v159 = vsub.f32 %v157, %v158
    %v160 = vand.u32 %v159, 4294901760
    %161 = vmatpush.xpose.msra.mxu0 %v160
    %v162 = vand.u32 %v84, 4294901760
    %v163 = vsub.f32 %v84, %v162
    %v164 = vand.u32 %v163, 4294901760
    %v165 = vsub.f32 %v163, %v164
    %v166 = vand.u32 %v165, 4294901760
    %167 = vmatpush.xpose.msra.mxu0 %v166
    %v168 = vand.u32 %v81, 4294901760
    %v169 = vsub.f32 %v81, %v168
    %v170 = vand.u32 %v169, 4294901760
    %v171 = vsub.f32 %v169, %v170
    %v172 = vand.u32 %v171, 4294901760
    %173 = vmatpush.xpose.msra.mxu0 %v172
    %v174 = vand.u32 %v78, 4294901760
    %v175 = vsub.f32 %v78, %v174
    %v176 = vand.u32 %v175, 4294901760
    %v177 = vsub.f32 %v175, %v176
    %v178 = vand.u32 %v177, 4294901760
    %179 = vmatpush.xpose.msra.mxu0 %v178
    %v180 = vand.u32 %v75, 4294901760
    %v181 = vsub.f32 %v75, %v180
    %v182 = vand.u32 %v181, 4294901760
    %v183 = vsub.f32 %v181, %v182
    %v184 = vand.u32 %v183, 4294901760
    %185 = vmatpush.xpose.msra.mxu0 %v184
    %v186 = vand.u32 %v72, 4294901760
    %v187 = vsub.f32 %v72, %v186
    %v188 = vand.u32 %v187, 4294901760
    %v189 = vsub.f32 %v187, %v188
    %v190 = vand.u32 %v189, 4294901760
    %191 = vmatpush.xpose.msra.mxu0 %v190
    %v192 = vand.u32 %v69, 4294901760
    %v193 = vsub.f32 %v69, %v192
    %v194 = vand.u32 %v193, 4294901760
    %v195 = vsub.f32 %v193, %v194
    %v196 = vand.u32 %v195, 4294901760
    %197 = vmatpush.xpose.msra.mxu0 %v196
    %v198 = vand.u32 %v66, 4294901760
    %v199 = vsub.f32 %v66, %v198
    %v200 = vand.u32 %v199, 4294901760
    %v201 = vsub.f32 %v199, %v200
    %v202 = vand.u32 %v201, 4294901760
    %203 = vmatpush.xpose.msra.mxu0 %v202
    %v204 = vand.u32 %v63, 4294901760
    %v205 = vsub.f32 %v63, %v204
    %v206 = vand.u32 %v205, 4294901760
    %v207 = vsub.f32 %v205, %v206
    %v208 = vand.u32 %v207, 4294901760
    %209 = vmatpush.xpose.msra.mxu0 %v208
    %v210 = vand.u32 %v60, 4294901760
    %v211 = vsub.f32 %v60, %v210
    %v212 = vand.u32 %v211, 4294901760
    %v213 = vsub.f32 %v211, %v212
    %v214 = vand.u32 %v213, 4294901760
    %215 = vmatpush.xpose.msra.mxu0 %v214
    %v216 = vand.u32 %v57, 4294901760
    %v217 = vsub.f32 %v57, %v216
    %v218 = vand.u32 %v217, 4294901760
    %v219 = vsub.f32 %v217, %v218
    %v220 = vand.u32 %v219, 4294901760
    %221 = vmatpush.xpose.msra.mxu0 %v220
    %v222 = vand.u32 %v54, 4294901760
    %v223 = vsub.f32 %v54, %v222
    %v224 = vand.u32 %v223, 4294901760
    %v225 = vsub.f32 %v223, %v224
    %v226 = vand.u32 %v225, 4294901760
    %227 = vmatpush.xpose.msra.mxu0 %v226
    %v228 = vand.u32 %v51, 4294901760
    %v229 = vsub.f32 %v51, %v228
    %v230 = vand.u32 %v229, 4294901760
    %v231 = vsub.f32 %v229, %v230
    %v232 = vand.u32 %v231, 4294901760
    %233 = vmatpush.xpose.msra.mxu0 %v232
    %v234 = vand.u32 %v48, 4294901760
    %v235 = vsub.f32 %v48, %v234
    %v236 = vand.u32 %v235, 4294901760
    %v237 = vsub.f32 %v235, %v236
    %v238 = vand.u32 %v237, 4294901760
    %239 = vmatpush.xpose.msra.mxu0 %v238
    %v240 = vand.u32 %v42, 4294901760
    %241 = vmatmul.f32.gmra.mxu0 %v240
    %v242 = vpop.f32.mrf.mxu0
    %v243 = vadd.f32 %v134, %v242
    %v244 = vand.u32 %v45, 4294901760
    %245 = vmatmul.f32.gmra.mxu0 %v244
    %v246 = vpop.f32.mrf.mxu0
    %v247 = vadd.f32 %v142, %v246
    %248 = vdwg.mxu0
    %v249 = vand.u32 %v93, 4294901760
    %v250 = vsub.f32 %v93, %v249
    %251 = vmatpush.xpose.msra.mxu0 %v250
    %v252 = vand.u32 %v90, 4294901760
    %v253 = vsub.f32 %v90, %v252
    %254 = vmatpush.xpose.msra.mxu0 %v253
    %v255 = vand.u32 %v87, 4294901760
    %v256 = vsub.f32 %v87, %v255
    %257 = vmatpush.xpose.msra.mxu0 %v256
    %v258 = vand.u32 %v84, 4294901760
    %v259 = vsub.f32 %v84, %v258
    %260 = vmatpush.xpose.msra.mxu0 %v259
    %v261 = vand.u32 %v81, 4294901760
    %v262 = vsub.f32 %v81, %v261
    %263 = vmatpush.xpose.msra.mxu0 %v262
    %v264 = vand.u32 %v78, 4294901760
    %v265 = vsub.f32 %v78, %v264
    %266 = vmatpush.xpose.msra.mxu0 %v265
    %v267 = vand.u32 %v75, 4294901760
    %v268 = vsub.f32 %v75, %v267
    %269 = vmatpush.xpose.msra.mxu0 %v268
    %v270 = vand.u32 %v72, 4294901760
    %v271 = vsub.f32 %v72, %v270
    %272 = vmatpush.xpose.msra.mxu0 %v271
    %v273 = vand.u32 %v69, 4294901760
    %v274 = vsub.f32 %v69, %v273
    %275 = vmatpush.xpose.msra.mxu0 %v274
    %v276 = vand.u32 %v66, 4294901760
    %v277 = vsub.f32 %v66, %v276
    %278 = vmatpush.xpose.msra.mxu0 %v277
    %v279 = vand.u32 %v63, 4294901760
    %v280 = vsub.f32 %v63, %v279
    %281 = vmatpush.xpose.msra.mxu0 %v280
    %v282 = vand.u32 %v60, 4294901760
    %v283 = vsub.f32 %v60, %v282
    %284 = vmatpush.xpose.msra.mxu0 %v283
    %v285 = vand.u32 %v57, 4294901760
    %v286 = vsub.f32 %v57, %v285
    %287 = vmatpush.xpose.msra.mxu0 %v286
    %v288 = vand.u32 %v54, 4294901760
    %v289 = vsub.f32 %v54, %v288
    %290 = vmatpush.xpose.msra.mxu0 %v289
    %v291 = vand.u32 %v51, 4294901760
    %v292 = vsub.f32 %v51, %v291
    %293 = vmatpush.xpose.msra.mxu0 %v292
    %v294 = vand.u32 %v48, 4294901760
    %v295 = vsub.f32 %v48, %v294
    %296 = vmatpush.xpose.msra.mxu0 %v295
    %v297 = vand.u32 %v42, 4294901760
    %v298 = vsub.f32 %v42, %v297
    %299 = vmatmul.f32.gmra.mxu0 %v298
    %v300 = vpop.f32.mrf.mxu0
    %v301 = vadd.f32 %v243, %v300
    %v302 = vand.u32 %v45, 4294901760
    %v303 = vsub.f32 %v45, %v302
    %304 = vmatmul.f32.gmra.mxu0 %v303
    %v305 = vpop.f32.mrf.mxu0
    %v306 = vadd.f32 %v247, %v305
    %307 = vdwg.mxu0
    %v308 = vand.u32 %v93, 4294901760
    %309 = vmatpush.xpose.msra.mxu0 %v308
    %v310 = vand.u32 %v90, 4294901760
    %311 = vmatpush.xpose.msra.mxu0 %v310
    %v312 = vand.u32 %v87, 4294901760
    %313 = vmatpush.xpose.msra.mxu0 %v312
    %v314 = vand.u32 %v84, 4294901760
    %315 = vmatpush.xpose.msra.mxu0 %v314
    %v316 = vand.u32 %v81, 4294901760
    %317 = vmatpush.xpose.msra.mxu0 %v316
    %v318 = vand.u32 %v78, 4294901760
    %319 = vmatpush.xpose.msra.mxu0 %v318
    %v320 = vand.u32 %v75, 4294901760
    %321 = vmatpush.xpose.msra.mxu0 %v320
    %v322 = vand.u32 %v72, 4294901760
    %323 = vmatpush.xpose.msra.mxu0 %v322
    %v324 = vand.u32 %v69, 4294901760
    %325 = vmatpush.xpose.msra.mxu0 %v324
    %v326 = vand.u32 %v66, 4294901760
    %327 = vmatpush.xpose.msra.mxu0 %v326
    %v328 = vand.u32 %v63, 4294901760
    %329 = vmatpush.xpose.msra.mxu0 %v328
    %v330 = vand.u32 %v60, 4294901760
    %331 = vmatpush.xpose.msra.mxu0 %v330
    %v332 = vand.u32 %v57, 4294901760
    %333 = vmatpush.xpose.msra.mxu0 %v332
    %v334 = vand.u32 %v54, 4294901760
    %335 = vmatpush.xpose.msra.mxu0 %v334
    %v336 = vand.u32 %v51, 4294901760
    %337 = vmatpush.xpose.msra.mxu0 %v336
    %v338 = vand.u32 %v48, 4294901760
    %339 = vmatpush.xpose.msra.mxu0 %v338
    %v340 = vand.u32 %v42, 4294901760
    %v341 = vsub.f32 %v42, %v340
    %v342 = vand.u32 %v341, 4294901760
    %343 = vmatmul.f32.gmra.mxu0 %v342
    %v344 = vpop.f32.mrf.mxu0
    %v345 = vadd.f32 %v301, %v344
    %v346 = vand.u32 %v45, 4294901760
    %v347 = vsub.f32 %v45, %v346
    %v348 = vand.u32 %v347, 4294901760
    %349 = vmatmul.f32.gmra.mxu0 %v348
    %v350 = vpop.f32.mrf.mxu0
    %v351 = vadd.f32 %v306, %v350
    %352 = vdwg.mxu0
    %v353 = vand.u32 %v93, 4294901760
    %v354 = vsub.f32 %v93, %v353
    %v355 = vand.u32 %v354, 4294901760
    %356 = vmatpush.xpose.msra.mxu0 %v355
    %v357 = vand.u32 %v90, 4294901760
    %v358 = vsub.f32 %v90, %v357
    %v359 = vand.u32 %v358, 4294901760
    %360 = vmatpush.xpose.msra.mxu0 %v359
    %v361 = vand.u32 %v87, 4294901760
    %v362 = vsub.f32 %v87, %v361
    %v363 = vand.u32 %v362, 4294901760
    %364 = vmatpush.xpose.msra.mxu0 %v363
    %v365 = vand.u32 %v84, 4294901760
    %v366 = vsub.f32 %v84, %v365
    %v367 = vand.u32 %v366, 4294901760
    %368 = vmatpush.xpose.msra.mxu0 %v367
    %v369 = vand.u32 %v81, 4294901760
    %v370 = vsub.f32 %v81, %v369
    %v371 = vand.u32 %v370, 4294901760
    %372 = vmatpush.xpose.msra.mxu0 %v371
    %v373 = vand.u32 %v78, 4294901760
    %v374 = vsub.f32 %v78, %v373
    %v375 = vand.u32 %v374, 4294901760
    %376 = vmatpush.xpose.msra.mxu0 %v375
    %v377 = vand.u32 %v75, 4294901760
    %v378 = vsub.f32 %v75, %v377
    %v379 = vand.u32 %v378, 4294901760
    %380 = vmatpush.xpose.msra.mxu0 %v379
    %v381 = vand.u32 %v72, 4294901760
    %v382 = vsub.f32 %v72, %v381
    %v383 = vand.u32 %v382, 4294901760
    %384 = vmatpush.xpose.msra.mxu0 %v383
    %v385 = vand.u32 %v69, 4294901760
    %v386 = vsub.f32 %v69, %v385
    %v387 = vand.u32 %v386, 4294901760
    %388 = vmatpush.xpose.msra.mxu0 %v387
    %v389 = vand.u32 %v66, 4294901760
    %v390 = vsub.f32 %v66, %v389
    %v391 = vand.u32 %v390, 4294901760
    %392 = vmatpush.xpose.msra.mxu0 %v391
    %v393 = vand.u32 %v63, 4294901760
    %v394 = vsub.f32 %v63, %v393
    %v395 = vand.u32 %v394, 4294901760
    %396 = vmatpush.xpose.msra.mxu0 %v395
    %v397 = vand.u32 %v60, 4294901760
    %v398 = vsub.f32 %v60, %v397
    %v399 = vand.u32 %v398, 4294901760
    %400 = vmatpush.xpose.msra.mxu0 %v399
    %v401 = vand.u32 %v57, 4294901760
    %v402 = vsub.f32 %v57, %v401
    %v403 = vand.u32 %v402, 4294901760
    %404 = vmatpush.xpose.msra.mxu0 %v403
    %v405 = vand.u32 %v54, 4294901760
    %v406 = vsub.f32 %v54, %v405
    %v407 = vand.u32 %v406, 4294901760
    %408 = vmatpush.xpose.msra.mxu0 %v407
    %v409 = vand.u32 %v51, 4294901760
    %v410 = vsub.f32 %v51, %v409
    %v411 = vand.u32 %v410, 4294901760
    %412 = vmatpush.xpose.msra.mxu0 %v411
    %v413 = vand.u32 %v48, 4294901760
    %v414 = vsub.f32 %v48, %v413
    %v415 = vand.u32 %v414, 4294901760
    %416 = vmatpush.xpose.msra.mxu0 %v415
    %v417 = vand.u32 %v42, 4294901760
    %418 = vmatmul.f32.gmra.mxu0 %v417
    %v419 = vpop.f32.mrf.mxu0
    %v420 = vadd.f32 %v345, %v419
    %v421 = vand.u32 %v45, 4294901760
    %422 = vmatmul.f32.gmra.mxu0 %v421
    %v423 = vpop.f32.mrf.mxu0
    %v424 = vadd.f32 %v351, %v423
    %425 = vdwg.mxu0
    %v426 = vand.u32 %v93, 4294901760
    %427 = vmatpush.xpose.msra.mxu0 %v426
    %v428 = vand.u32 %v90, 4294901760
    %429 = vmatpush.xpose.msra.mxu0 %v428
    %v430 = vand.u32 %v87, 4294901760
    %431 = vmatpush.xpose.msra.mxu0 %v430
    %v432 = vand.u32 %v84, 4294901760
    %433 = vmatpush.xpose.msra.mxu0 %v432
    %v434 = vand.u32 %v81, 4294901760
    %435 = vmatpush.xpose.msra.mxu0 %v434
    %v436 = vand.u32 %v78, 4294901760
    %437 = vmatpush.xpose.msra.mxu0 %v436
    %v438 = vand.u32 %v75, 4294901760
    %439 = vmatpush.xpose.msra.mxu0 %v438
    %v440 = vand.u32 %v72, 4294901760
    %441 = vmatpush.xpose.msra.mxu0 %v440
    %v442 = vand.u32 %v69, 4294901760
    %443 = vmatpush.xpose.msra.mxu0 %v442
    %v444 = vand.u32 %v66, 4294901760
    %445 = vmatpush.xpose.msra.mxu0 %v444
    %v446 = vand.u32 %v63, 4294901760
    %447 = vmatpush.xpose.msra.mxu0 %v446
    %v448 = vand.u32 %v60, 4294901760
    %449 = vmatpush.xpose.msra.mxu0 %v448
    %v450 = vand.u32 %v57, 4294901760
    %451 = vmatpush.xpose.msra.mxu0 %v450
    %v452 = vand.u32 %v54, 4294901760
    %453 = vmatpush.xpose.msra.mxu0 %v452
    %v454 = vand.u32 %v51, 4294901760
    %455 = vmatpush.xpose.msra.mxu0 %v454
    %v456 = vand.u32 %v48, 4294901760
    %457 = vmatpush.xpose.msra.mxu0 %v456
    %v458 = vand.u32 %v42, 4294901760
    %459 = vmatmul.f32.gmra.mxu0 %v458
    %v460 = vpop.f32.mrf.mxu0
    %v461 = vadd.f32 %v420, %v460
    %v462 = vand.u32 %v45, 4294901760
    %463 = vmatmul.f32.gmra.mxu0 %v462
    %v464 = vpop.f32.mrf.mxu0
    %v465 = vadd.f32 %v424, %v464
    %466 = vdwg.mxu0
    %467 = vst [vmem:[#allocation2] sm:$0xff] %v461
    %468 = vst [vmem:[#allocation2 + $0x8] sm:$0xff] %v465
    %469 = vmax.xlane.f32.xlu0 %v461
    %v470 = vpop.xlane.xlu0 %469
    %471 = vmax.xlane.f32.xlu0 %v465
    %v472 = vpop.xlane.xlu0 %471
    %v473 = vsub.f32 %v461, %v470
    %v474 = vsub.f32 %v465, %v472
    %v475 = vmul.f32 %v473, 1.442695
    %v476 = vpow.pop %v475
    %v477 = vmul.f32 %v474, 1.442695
    %v478 = vpow.pop %v477
    %479 = vadd.xlane.f32.xlu0 %v476
    %v480 = vpop.xlane.xlu0 %479
    %481 = vadd.xlane.f32.xlu0 %v478
    %v482 = vpop.xlane.xlu0 %481
    %v483 = vlog2.pop %v480
    %v484 = vmul.f32 %v483, 0.6931472
    %v485 = vlog2.pop %v482
    %v486 = vmul.f32 %v485, 0.6931472
    %v487 = vsub.f32 %v473, %v484
    %v488 = vsub.f32 %v474, %v486
    %489 = vst [vmem:[#allocation4] sm:$0xff] %v487
    %490 = vst [vmem:[#allocation4 + $0x8] sm:$0xff] %v488
    // Predicated region
    $region14: #{tpu_custom_call.1} parent=1 // pred_check
      _
    $region15: #{tpu_custom_call.1} parent=1 // pred_check_branch
      %492 = sbr.rel (0) target = $region17
    $region16: #{tpu_custom_call.1} parent=1 // pred_region
      %494 = vsyncadd [#allocation3], 0
      %s495 = sshll.u32 [#allocation2], 4
      %s496 = int_to_ptr.vmem [resolvable:$true] %s495
      %s497 = sshll.u32 %s3, 4
      %s498 = int_to_ptr.hbm [resolvable:$true] %s497
      %503 = dma.vmem_to_hbm [thread:$0]  %s496, 256, %s498, [#allocation3], 128, 128, 8
    $region17: #{tpu_custom_call.1} parent=1 // pred_fallthru
      _
    // Predicated region
    $region18: #{tpu_custom_call.1} parent=1 // pred_check
      _
    $region19: #{tpu_custom_call.1} parent=1 // pred_check_branch
      %505 = sbr.rel (0) target = $region21
    $region20: #{tpu_custom_call.1} parent=1 // pred_region
      %507 = vsyncadd [#allocation5], 0
      %s508 = sshll.u32 [#allocation4], 4
      %s509 = int_to_ptr.vmem [resolvable:$true] %s508
      %s510 = sshll.u32 %s4, 4
      %s511 = int_to_ptr.hbm [resolvable:$true] %s510
      %516 = dma.vmem_to_hbm [thread:$0]  %s509, 256, %s511, [#allocation5], 128, 128, 8
    $region21: #{tpu_custom_call.1} parent=1 // pred_fallthru
      _
    // Predicated region
    $region22: #{tpu_custom_call.1} parent=1 // pred_check
      _
    $region23: #{tpu_custom_call.1} parent=1 // pred_check_branch
      %518 = sbr.rel (0) target = $region25
    $region24: #{tpu_custom_call.1} parent=1 // pred_region
      %520 = dma.done [#allocation3], 256
    $region25: #{tpu_custom_call.1} parent=1 // pred_fallthru
      _
    // Predicated region
    $region26: #{tpu_custom_call.1} parent=1 // pred_check
      _
    $region27: #{tpu_custom_call.1} parent=1 // pred_check_branch
      %522 = sbr.rel (0) target = $region29
    $region28: #{tpu_custom_call.1} parent=1 // pred_region
      %524 = dma.done [#allocation5], 256
    $region29: #{tpu_custom_call.1} parent=1 // pred_fallthru
      _
    %525 = vsyncpa [#allocation3], 1
    %526 = vsyncpa [#allocation5], 1

</llo_original>
